<compile_context>
chip_gen: v6e
topology: v6e:2x2x1
jax: 0.10.0
libtpu: 0.0.40
codegen_flags: <defaults>
</compile_context>

<pallas_src>
import jax
import jax.numpy as jnp
from jax.experimental import pallas as pl
from jax.experimental.pallas import tpu as pltpu

TB_MAX = 2048  # max batch-tile rows; per-step VMEM stays ~1-2 MiB


def _round_up(a, m):
    return ((a + m - 1) // m) * m


def _choose_tile(B):
    """Pick (tile_rows, n_steps) for the batch grid axis."""
    n = max(1, pl.cdiv(B, TB_MAX))
    if B >= 256:
        # v7x: batch axis is sharded across the 2 TensorCores -> want >=2 even steps.
        n = max(n, 2)
        n += n % 2
    if n == 1:
        # Full-extent block along batch (block dim == array dim): no padding,
        # no ragged block, valid for any B (8-divisibility not required).
        tb = B
    else:
        tb = _round_up(pl.cdiv(B, n), 128)
    return tb, pl.cdiv(B, tb)


def mlp_kernel(x_ref, w1_ref, b1_ref, w2_ref, b2_ref, w3_ref, b3_ref, o_ref):
    def sigmoid(z):
        # tanh form: one EUP transcendental, f32 throughout (v5e-safe).
        return 0.5 * jnp.tanh(0.5 * z) + 0.5

    # In-kernel f32 -> bf16 cast of the streamed x tile (x stays f32 in HBM).
    x = x_ref[...].astype(jnp.bfloat16)                       # (tb, 72)
    # layer1: (tb,72)bf16 @ (72,100)bf16 -> f32 acc, bias + sigmoid in f32
    z1 = jnp.dot(x, w1_ref[...], preferred_element_type=jnp.float32)
    h1 = sigmoid(z1 + b1_ref[...])
    # layer2: (tb,100) @ (100,30)
    z2 = jnp.dot(h1.astype(jnp.bfloat16), w2_ref[...],
                 preferred_element_type=jnp.float32)
    h2 = sigmoid(z2 + b2_ref[...])
    # layer3: (tb,30) @ (30,9), no activation
    z3 = jnp.dot(h2.astype(jnp.bfloat16), w3_ref[...],
                 preferred_element_type=jnp.float32)
    # Row-major store (tb, 9): no wrapper transpose-back needed.
    o_ref[...] = z3 + b3_ref[...]


def net_forward(x, params):
    """x: (B, 72) f32 -> (B, 9) f32."""
    w1, b1, w2, b2, w3, b3 = params
    B = x.shape[0]
    tb, n_steps = _choose_tile(B)

    # Weight matrices as bf16 (tiny one-time casts; DMA'd once, VMEM-resident).
    w1b = w1.astype(jnp.bfloat16)
    w2b = w2.astype(jnp.bfloat16)
    w3b = w3.astype(jnp.bfloat16)

    # Constant block index -> fetched once, stays resident across the grid.
    const = lambda arr: pl.BlockSpec(arr.shape, lambda i: (0, 0))

    return pl.pallas_call(
        mlp_kernel,
        out_shape=jax.ShapeDtypeStruct((B, 9), jnp.float32),
        grid=(n_steps,),
        in_specs=[
            pl.BlockSpec((tb, 72), lambda i: (i, 0)),   # streamed f32 batch tiles
            const(w1b), const(b1),
            const(w2b), const(b2),
            const(w3b), const(b3),
        ],
        out_specs=pl.BlockSpec((tb, 9), lambda i: (i, 0)),
        compiler_params=pltpu.CompilerParams(
            dimension_semantics=("parallel",)),
    )(x, w1b, b1, w2b, b2, w3b, b3)


def init_params(key):
    """Mimics nn.Linear default init: U(-1/sqrt(fan_in), 1/sqrt(fan_in)).
    Weights stored pre-transposed as (in_features, out_features), f32 masters."""
    dims = [(72, 100), (100, 30), (30, 9)]
    params = []
    for i, (fin, fout) in enumerate(dims):
        kw, kb = jax.random.split(jax.random.fold_in(key, i))
        bound = 1.0 / jnp.sqrt(float(fin))
        w = jax.random.uniform(kw, (fin, fout), jnp.float32, -bound, bound)
        b = jax.random.uniform(kb, (1, fout), jnp.float32, -bound, bound)
        params += [w, b]
    return tuple(params)


def _reference(x, params):
    w1, b1, w2, b2, w3, b3 = params
    h = jax.nn.sigmoid(x @ w1 + b1)
    h = jax.nn.sigmoid(h @ w2 + b2)
    return h @ w3 + b3


if __name__ == "__main__":
    key = jax.random.PRNGKey(0)
    kx, kp = jax.random.split(key)
    params = init_params(kp)

    # Main small-shape check (B=8): single full-extent block.
    B = 8
    x = jax.random.normal(kx, (B, 72), dtype=jnp.float32)
    out = jax.block_until_ready(net_forward(x, params))
    ref = _reference(x, params)
    assert out.shape == (B, 9)
    assert out.dtype == jnp.float32
    # bf16 weight/matmul path -> loosened tolerance vs. f32 reference.
    assert jnp.allclose(out, ref, atol=2e-2, rtol=2e-2)

    # Batch not a multiple of 8: full-extent block, no padding needed.
    B2 = 20
    x2 = jax.random.normal(jax.random.fold_in(kx, 1), (B2, 72), dtype=jnp.float32)
    out2 = jax.block_until_ready(net_forward(x2, params))
    ref2 = _reference(x2, params)
    assert out2.shape == (B2, 9)
    assert jnp.allclose(out2, ref2, atol=2e-2, rtol=2e-2)

    # Multi-step grid with a ragged last block (exercises OOB masking, 2 steps).
    B3 = 384
    x3 = jax.random.normal(jax.random.fold_in(kx, 2), (B3, 72), dtype=jnp.float32)
    out3 = jax.block_until_ready(net_forward(x3, params))
    ref3 = _reference(x3, params)
    assert out3.shape == (B3, 9)
    assert jnp.allclose(out3, ref3, atol=2e-2, rtol=2e-2)

    print("KERNEL_OK")
</pallas_src>

<mosaic_0001>
module attributes {stable_mosaic.version = 11 : i64} {
  func.func @mlp_kernel(%arg0: i32, %arg1: memref<8x72xf32, #tpu.memory_space<vmem>>, %arg2: memref<72x100xbf16, #tpu.memory_space<vmem>>, %arg3: memref<1x100xf32, #tpu.memory_space<vmem>>, %arg4: memref<100x30xbf16, #tpu.memory_space<vmem>>, %arg5: memref<1x30xf32, #tpu.memory_space<vmem>>, %arg6: memref<30x9xbf16, #tpu.memory_space<vmem>>, %arg7: memref<1x9xf32, #tpu.memory_space<vmem>>, %arg8: memref<8x9xf32, #tpu.memory_space<vmem>>) attributes {dimension_semantics = [#tpu.dimension_semantics<parallel>], iteration_bounds = array<i64: 1>, scalar_prefetch = 0 : i64, scratch_operands = 0 : i64, tpu.core_type = #tpu.core_type<tc>, window_params = [{transform_indices = @transform_0, window_bounds = array<i64: 8, 72>}, {pipeline_mode = #tpu.pipeline_mode<synchronous>, transform_indices = @transform_1, window_bounds = array<i64: 72, 100>}, {pipeline_mode = #tpu.pipeline_mode<synchronous>, transform_indices = @transform_2, window_bounds = array<i64: 1, 100>}, {pipeline_mode = #tpu.pipeline_mode<synchronous>, transform_indices = @transform_3, window_bounds = array<i64: 100, 30>}, {pipeline_mode = #tpu.pipeline_mode<synchronous>, transform_indices = @transform_4, window_bounds = array<i64: 1, 30>}, {pipeline_mode = #tpu.pipeline_mode<synchronous>, transform_indices = @transform_5, window_bounds = array<i64: 30, 9>}, {pipeline_mode = #tpu.pipeline_mode<synchronous>, transform_indices = @transform_6, window_bounds = array<i64: 1, 9>}, {transform_indices = @transform_7, window_bounds = array<i64: 8, 9>}]} {
    %c0 = arith.constant 0 : index
    %c0_0 = arith.constant 0 : index
    %0 = vector.load %arg1[%c0, %c0_0] : memref<8x72xf32, #tpu.memory_space<vmem>>, vector<8x72xf32>
    %1 = arith.truncf %0 : vector<8x72xf32> to vector<8x72xbf16>
    %c0_1 = arith.constant 0 : index
    %c0_2 = arith.constant 0 : index
    %2 = vector.load %arg2[%c0_1, %c0_2] : memref<72x100xbf16, #tpu.memory_space<vmem>>, vector<72x100xbf16>
    %cst = arith.constant dense<0.000000e+00> : vector<8x100xf32>
    %3 = tpu.matmul %1, %2, %cst {dimension_numbers = #tpu.dot_dimension_numbers<[1], [0], [0], [1], [0, 0, 1, 1], [], []>} : vector<8x72xbf16>, vector<72x100xbf16>, vector<8x100xf32> -> vector<8x100xf32>
    %c0_3 = arith.constant 0 : index
    %c0_4 = arith.constant 0 : index
    %4 = vector.load %arg3[%c0_3, %c0_4] : memref<1x100xf32, #tpu.memory_space<vmem>>, vector<1x100xf32>
    %5 = vector.broadcast %4 : vector<1x100xf32> to vector<8x100xf32>
    %6 = arith.addf %3, %5 : vector<8x100xf32>
    %cst_5 = arith.constant 5.000000e-01 : f32
    %7 = vector.broadcast %cst_5 : f32 to vector<8x100xf32>
    %8 = arith.mulf %7, %6 : vector<8x100xf32>
    %9 = math.tanh %8 : vector<8x100xf32>
    %cst_6 = arith.constant 5.000000e-01 : f32
    %10 = vector.broadcast %cst_6 : f32 to vector<8x100xf32>
    %11 = arith.mulf %10, %9 : vector<8x100xf32>
    %cst_7 = arith.constant 5.000000e-01 : f32
    %12 = vector.broadcast %cst_7 : f32 to vector<8x100xf32>
    %13 = arith.addf %11, %12 : vector<8x100xf32>
    %14 = arith.truncf %13 : vector<8x100xf32> to vector<8x100xbf16>
    %c0_8 = arith.constant 0 : index
    %c0_9 = arith.constant 0 : index
    %15 = vector.load %arg4[%c0_8, %c0_9] : memref<100x30xbf16, #tpu.memory_space<vmem>>, vector<100x30xbf16>
    %cst_10 = arith.constant dense<0.000000e+00> : vector<8x30xf32>
    %16 = tpu.matmul %14, %15, %cst_10 {dimension_numbers = #tpu.dot_dimension_numbers<[1], [0], [0], [1], [0, 0, 1, 1], [], []>} : vector<8x100xbf16>, vector<100x30xbf16>, vector<8x30xf32> -> vector<8x30xf32>
    %c0_11 = arith.constant 0 : index
    %c0_12 = arith.constant 0 : index
    %17 = vector.load %arg5[%c0_11, %c0_12] : memref<1x30xf32, #tpu.memory_space<vmem>>, vector<1x30xf32>
    %18 = vector.broadcast %17 : vector<1x30xf32> to vector<8x30xf32>
    %19 = arith.addf %16, %18 : vector<8x30xf32>
    %cst_13 = arith.constant 5.000000e-01 : f32
    %20 = vector.broadcast %cst_13 : f32 to vector<8x30xf32>
    %21 = arith.mulf %20, %19 : vector<8x30xf32>
    %22 = math.tanh %21 : vector<8x30xf32>
    %cst_14 = arith.constant 5.000000e-01 : f32
    %23 = vector.broadcast %cst_14 : f32 to vector<8x30xf32>
    %24 = arith.mulf %23, %22 : vector<8x30xf32>
    %cst_15 = arith.constant 5.000000e-01 : f32
    %25 = vector.broadcast %cst_15 : f32 to vector<8x30xf32>
    %26 = arith.addf %24, %25 : vector<8x30xf32>
    %27 = arith.truncf %26 : vector<8x30xf32> to vector<8x30xbf16>
    %c0_16 = arith.constant 0 : index
    %c0_17 = arith.constant 0 : index
    %28 = vector.load %arg6[%c0_16, %c0_17] : memref<30x9xbf16, #tpu.memory_space<vmem>>, vector<30x9xbf16>
    %cst_18 = arith.constant dense<0.000000e+00> : vector<8x9xf32>
    %29 = tpu.matmul %27, %28, %cst_18 {dimension_numbers = #tpu.dot_dimension_numbers<[1], [0], [0], [1], [0, 0, 1, 1], [], []>} : vector<8x30xbf16>, vector<30x9xbf16>, vector<8x9xf32> -> vector<8x9xf32>
    %c0_19 = arith.constant 0 : index
    %c0_20 = arith.constant 0 : index
    %30 = vector.load %arg7[%c0_19, %c0_20] : memref<1x9xf32, #tpu.memory_space<vmem>>, vector<1x9xf32>
    %31 = vector.broadcast %30 : vector<1x9xf32> to vector<8x9xf32>
    %32 = arith.addf %29, %31 : vector<8x9xf32>
    %c0_21 = arith.constant 0 : index
    %c0_22 = arith.constant 0 : index
    %33 = vector.load %arg8[%c0_21, %c0_22] : memref<8x9xf32, #tpu.memory_space<vmem>>, vector<8x9xf32>
    tpu.vector_store %arg8[%c0_21, %c0_22], %32 {strides = array<i32>} : memref<8x9xf32, #tpu.memory_space<vmem>>, vector<8x9xf32>,
    return
  }
  func.func @transform_0(%arg0: i32) -> (i32, i32) {
    %c0_i32 = arith.constant 0 : i32
    %c0_i32_0 = arith.constant 0 : i32
    return %arg0, %c0_i32 : i32, i32
  }
  func.func @transform_1(%arg0: i32) -> (i32, i32) {
    %c0_i32 = arith.constant 0 : i32
    %c0_i32_0 = arith.constant 0 : i32
    %c0_i32_1 = arith.constant 0 : i32
    return %c0_i32, %c0_i32_0 : i32, i32
  }
  func.func @transform_2(%arg0: i32) -> (i32, i32) {
    %c0_i32 = arith.constant 0 : i32
    %c0_i32_0 = arith.constant 0 : i32
    %c0_i32_1 = arith.constant 0 : i32
    return %c0_i32, %c0_i32_0 : i32, i32
  }
  func.func @transform_3(%arg0: i32) -> (i32, i32) {
    %c0_i32 = arith.constant 0 : i32
    %c0_i32_0 = arith.constant 0 : i32
    %c0_i32_1 = arith.constant 0 : i32
    return %c0_i32, %c0_i32_0 : i32, i32
  }
  func.func @transform_4(%arg0: i32) -> (i32, i32) {
    %c0_i32 = arith.constant 0 : i32
    %c0_i32_0 = arith.constant 0 : i32
    %c0_i32_1 = arith.constant 0 : i32
    return %c0_i32, %c0_i32_0 : i32, i32
  }
  func.func @transform_5(%arg0: i32) -> (i32, i32) {
    %c0_i32 = arith.constant 0 : i32
    %c0_i32_0 = arith.constant 0 : i32
    %c0_i32_1 = arith.constant 0 : i32
    return %c0_i32, %c0_i32_0 : i32, i32
  }
  func.func @transform_6(%arg0: i32) -> (i32, i32) {
    %c0_i32 = arith.constant 0 : i32
    %c0_i32_0 = arith.constant 0 : i32
    %c0_i32_1 = arith.constant 0 : i32
    return %c0_i32, %c0_i32_0 : i32, i32
  }
  func.func @transform_7(%arg0: i32) -> (i32, i32) {
    %c0_i32 = arith.constant 0 : i32
    %c0_i32_0 = arith.constant 0 : i32
    return %arg0, %c0_i32 : i32, i32
  }
}

</mosaic_0001>

<llo_original>
// kernel: tpu_custom_call.1
$region0: #{tpu_custom_call.1}
  #allocation0 [shape = 'u32[]', space=smem, size = 0x4, offset = 0x4, fixed_abs, tag = 'smem constant byte address 0x4 - core index']
  #allocation1 [shape = 'u32[144,128]{1,0:T(1,128)}', space=vmem, size = 0x12000, scoped, tag = 'internal scratch']
  %s0 = inlined_call_operand.vmem [shape: f32[8,72], index: 0, kind: input, shape index: {}]
  %s1 = inlined_call_operand.vmem [shape: bf16[72,100], index: 1, kind: input, shape index: {}]
  %s2 = inlined_call_operand.vmem [shape: f32[1,100], index: 2, kind: input, shape index: {}]
  %s3 = inlined_call_operand.vmem [shape: bf16[100,30], index: 3, kind: input, shape index: {}]
  %s4 = inlined_call_operand.vmem [shape: f32[1,30], index: 4, kind: input, shape index: {}]
  %s5 = inlined_call_operand.vmem [shape: bf16[30,9], index: 5, kind: input, shape index: {}]
  %s6 = inlined_call_operand.vmem [shape: f32[1,9], index: 6, kind: input, shape index: {}]
  %s7 = inlined_call_operand.hbm [shape: f32[8,9], index: 7, kind: output, shape index: {}]
  %s8 = sld [smem:[#allocation0]]
  $region38: #{tpu_custom_call.1} parent=0
    _
  %s10 = ssub.s32 1, %s8
  %s11 = scalar_select 0, %s10, %s8
  $region1: #{tpu_custom_call.1} parent=0
    #allocation2 [shape = 'u8[4096]{0}', space=vmem, size = 0x1000, scoped, tag = 'output window, operand 0, single buffered']
    #allocation3 [shape = 's32[1]{0}', space=sflag, size = 0x4, scoped, tag = 'scoped memory for tpu_custom_call.1']
    %12 = vsyncpa [#allocation3], 0
    // Predicated region
    $region2: #{tpu_custom_call.1} parent=1 // pred_check
      _
    $region3: #{tpu_custom_call.1} parent=1 // pred_check_branch
      %14 = sbr.rel (0) target = $region5
    $region4: #{tpu_custom_call.1} parent=1 // pred_region
      _
    $region5: #{tpu_custom_call.1} parent=1 // pred_fallthru
      _
    // Predicated region
    $region6: #{tpu_custom_call.1} parent=1 // pred_check
      _
    $region7: #{tpu_custom_call.1} parent=1 // pred_check_branch
      %16 = sbr.rel (0) target = $region9
    $region8: #{tpu_custom_call.1} parent=1 // pred_region
      _
    $region9: #{tpu_custom_call.1} parent=1 // pred_fallthru
      _
    // Predicated region
    $region10: #{tpu_custom_call.1} parent=1 // pred_check
      _
    $region11: #{tpu_custom_call.1} parent=1 // pred_check_branch
      %18 = sbr.rel (0) target = $region13
    $region12: #{tpu_custom_call.1} parent=1 // pred_region
      _
    $region13: #{tpu_custom_call.1} parent=1 // pred_fallthru
      _
    // Predicated region
    $region14: #{tpu_custom_call.1} parent=1 // pred_check
      _
    $region15: #{tpu_custom_call.1} parent=1 // pred_check_branch
      %20 = sbr.rel (0) target = $region17
    $region16: #{tpu_custom_call.1} parent=1 // pred_region
      _
    $region17: #{tpu_custom_call.1} parent=1 // pred_fallthru
      _
    // Predicated region
    $region18: #{tpu_custom_call.1} parent=1 // pred_check
      _
    $region19: #{tpu_custom_call.1} parent=1 // pred_check_branch
      %22 = sbr.rel (0) target = $region21
    $region20: #{tpu_custom_call.1} parent=1 // pred_region
      _
    $region21: #{tpu_custom_call.1} parent=1 // pred_fallthru
      _
    // Predicated region
    $region22: #{tpu_custom_call.1} parent=1 // pred_check
      _
    $region23: #{tpu_custom_call.1} parent=1 // pred_check_branch
      %24 = sbr.rel (0) target = $region25
    $region24: #{tpu_custom_call.1} parent=1 // pred_region
      _
    $region25: #{tpu_custom_call.1} parent=1 // pred_fallthru
      _
    // Predicated region
    $region26: #{tpu_custom_call.1} parent=1 // pred_check
      _
    $region27: #{tpu_custom_call.1} parent=1 // pred_check_branch
      %26 = sbr.rel (0) target = $region29
    $region28: #{tpu_custom_call.1} parent=1 // pred_region
      _
    $region29: #{tpu_custom_call.1} parent=1 // pred_fallthru
      _
    %v28 = vld [vmem:[%s0] sm:$0xff]
    %v29 = vpack.c.bf16 %v28, %v28
    %v30 = vld [vmem:[%s1] sm:$0xf]
    %v31 = vld [vmem:[%s1 + $0x4] sm:$0xf]
    %v32 = vld [vmem:[%s1 + $0x8] sm:$0xf]
    %v33 = vld [vmem:[%s1 + $0xc] sm:$0xf]
    %v34 = vld [vmem:[%s1 + $0x10] sm:$0xf]
    %v35 = vld [vmem:[%s1 + $0x14] sm:$0xf]
    %v36 = vld [vmem:[%s1 + $0x18] sm:$0xf]
    %v37 = vld [vmem:[%s1 + $0x1c] sm:$0xf]
    %v38 = vld [vmem:[%s1 + $0x20] sm:$0xf]
    %v39 = vld [vmem:[%s2] sm:$0x1]
    %v41 = vlaneseq
    %v42 = vshrl.u32 %v41, 7
    %v43 = vsub.s32 0, %v42
    %v44 = vrot.slane %v39, %v43
    %v55 = vunpack.c.l.b16 %v30
    %v56 = vunpack.c.l.b16 %v31
    %v57 = vunpack.c.l.b16 %v32
    %v58 = vunpack.c.l.b16 %v33
    %v59 = vunpack.c.l.b16 %v34
    %v60 = vunpack.c.l.b16 %v35
    %v61 = vunpack.c.l.b16 %v36
    %v62 = vunpack.c.l.b16 %v37
    %v63 = vunpack.c.l.b16 %v38
    %v64 = vpack.c.b16 %v56, %v55
    %v65 = vpack.c.b16 %v58, %v57
    %v66 = vpack.c.b16 %v60, %v59
    %v67 = vpack.c.b16 %v62, %v61
    %v68 = vpack.c.b16 %v63, %v63
    %vm73 = vcmask 588800
    %v75 = vsel %vm73, %v29, 0
    %vm77 = vcmask 1043456
    %v79 = vsel %vm77, %v68, 0
    %81 = vmatprep.subr.bf16.mxu0 0
    %82 = vmatpush1.bf16.msra.mxu0 0
    %83 = vmatprep.subr.bf16.mxu0 0
    %84 = vmatpush1.bf16.msra.mxu0 0
    %85 = vmatprep.subr.bf16.mxu0 0
    %86 = vmatpush1.bf16.msra.mxu0 0
    %87 = vmatprep.subr.bf16.mxu0 0
    %88 = vmatpush1.bf16.msra.mxu0 %v79
    %89 = vmatprep.subr.bf16.mxu0 0
    %90 = vmatpush1.bf16.msra.mxu0 %v67
    %91 = vmatprep.subr.bf16.mxu0 0
    %92 = vmatpush1.bf16.msra.mxu0 %v66
    %93 = vmatprep.subr.bf16.mxu0 0
    %94 = vmatpush1.bf16.msra.mxu0 %v65
    %95 = vmatprep.subr.bf16.mxu0 0
    %96 = vmatpush1.bf16.msra.mxu0 %v64
    %97 = vmatprep.subr.bf16.mxu0 0
    %98 = vmatpush2.bf16.msra.mxu0 0
    %99 = vmatprep.subr.bf16.mxu0 0
    %100 = vmatpush2.bf16.msra.mxu0 0
    %101 = vmatprep.subr.bf16.mxu0 0
    %102 = vmatpush2.bf16.msra.mxu0 0
    %103 = vmatprep.subr.bf16.mxu0 0
    %104 = vmatpush2.bf16.msra.mxu0 0
    %105 = vmatprep.subr.bf16.mxu0 0
    %106 = vmatpush2.bf16.msra.mxu0 0
    %107 = vmatprep.subr.bf16.mxu0 0
    %108 = vmatpush2.bf16.msra.mxu0 0
    %109 = vmatprep.subr.bf16.mxu0 0
    %110 = vmatpush2.bf16.msra.mxu0 0
    %111 = vmatprep.subr.bf16.mxu0 0
    %112 = vmatpush2.bf16.msra.mxu0 0
    %113 = vmatprep.mubr.bf16.mxu0 0
    %114 = vmatmul.mubr.bf16.gmra.mxu0 %v75
    %v115 = vpop.f32.mrf.mxu0
    %v116 = vadd.f32 %v44, %v115
    %v117 = vpop.f32.mrf.mxu0
    %v118 = vpop.f32.mrf.mxu0
    %v119 = vpop.f32.mrf.mxu0
    %120 = vdwg.mxu0
    %v121 = vmul.f32 %v116, 0.5
    %v122 = vtanh.pop %v121
    %v123 = vmul.f32 %v122, 0.5
    %v124 = vadd.f32 %v123, 0.5
    %v125 = vpack.c.bf16 %v124, %v124
    %v126 = vld [vmem:[%s3] sm:$0xf]
    %v127 = vld [vmem:[%s3 + $0x4] sm:$0xf]
    %v128 = vld [vmem:[%s3 + $0x8] sm:$0xf]
    %v129 = vld [vmem:[%s3 + $0xc] sm:$0xf]
    %v130 = vld [vmem:[%s3 + $0x10] sm:$0xf]
    %v131 = vld [vmem:[%s3 + $0x14] sm:$0xf]
    %v132 = vld [vmem:[%s3 + $0x18] sm:$0xf]
    %v133 = vld [vmem:[%s3 + $0x1c] sm:$0xf]
    %v134 = vld [vmem:[%s3 + $0x20] sm:$0xf]
    %v135 = vld [vmem:[%s3 + $0x24] sm:$0xf]
    %v136 = vld [vmem:[%s3 + $0x28] sm:$0xf]
    %v137 = vld [vmem:[%s3 + $0x2c] sm:$0xf]
    %v138 = vld [vmem:[%s3 + $0x30] sm:$0x3]
    %v139 = vld [vmem:[%s4] sm:$0x1]
    %v141 = vlaneseq
    %v142 = vshrl.u32 %v141, 7
    %v143 = vsub.s32 0, %v142
    %v144 = vrot.slane %v139, %v143
    %v159 = vunpack.c.l.b16 %v126
    %v160 = vunpack.c.l.b16 %v127
    %v161 = vunpack.c.l.b16 %v128
    %v162 = vunpack.c.l.b16 %v129
    %v163 = vunpack.c.l.b16 %v130
    %v164 = vunpack.c.l.b16 %v131
    %v165 = vunpack.c.l.b16 %v132
    %v166 = vunpack.c.l.b16 %v133
    %v167 = vunpack.c.l.b16 %v134
    %v168 = vunpack.c.l.b16 %v135
    %v169 = vunpack.c.l.b16 %v136
    %v170 = vunpack.c.l.b16 %v137
    %v171 = vunpack.c.l.b16 %v138
    %v172 = vpack.c.b16 %v160, %v159
    %v173 = vpack.c.b16 %v162, %v161
    %v174 = vpack.c.b16 %v164, %v163
    %v175 = vpack.c.b16 %v166, %v165
    %v176 = vpack.c.b16 %v168, %v167
    %v177 = vpack.c.b16 %v170, %v169
    %v178 = vpack.c.b16 %v171, %v171
    %vm185 = vcmask 818176
    %v187 = vsel %vm185, %v125, 0
    %vm189 = vcmask 1041408
    %v191 = vsel %vm189, %v178, 0
    %193 = vmatprep.subr.bf16.mxu0 0
    %194 = vmatpush1.bf16.msra.mxu0 0
    %195 = vmatprep.subr.bf16.mxu0 0
    %196 = vmatpush1.bf16.msra.mxu0 %v191
    %197 = vmatprep.subr.bf16.mxu0 0
    %198 = vmatpush1.bf16.msra.mxu0 %v177
    %199 = vmatprep.subr.bf16.mxu0 0
    %200 = vmatpush1.bf16.msra.mxu0 %v176
    %201 = vmatprep.subr.bf16.mxu0 0
    %202 = vmatpush1.bf16.msra.mxu0 %v175
    %203 = vmatprep.subr.bf16.mxu0 0
    %204 = vmatpush1.bf16.msra.mxu0 %v174
    %205 = vmatprep.subr.bf16.mxu0 0
    %206 = vmatpush1.bf16.msra.mxu0 %v173
    %207 = vmatprep.subr.bf16.mxu0 0
    %208 = vmatpush1.bf16.msra.mxu0 %v172
    %209 = vmatprep.subr.bf16.mxu0 0
    %210 = vmatpush2.bf16.msra.mxu0 0
    %211 = vmatprep.subr.bf16.mxu0 0
    %212 = vmatpush2.bf16.msra.mxu0 0
    %213 = vmatprep.subr.bf16.mxu0 0
    %214 = vmatpush2.bf16.msra.mxu0 0
    %215 = vmatprep.subr.bf16.mxu0 0
    %216 = vmatpush2.bf16.msra.mxu0 0
    %217 = vmatprep.subr.bf16.mxu0 0
    %218 = vmatpush2.bf16.msra.mxu0 0
    %219 = vmatprep.subr.bf16.mxu0 0
    %220 = vmatpush2.bf16.msra.mxu0 0
    %221 = vmatprep.subr.bf16.mxu0 0
    %222 = vmatpush2.bf16.msra.mxu0 0
    %223 = vmatprep.subr.bf16.mxu0 0
    %224 = vmatpush2.bf16.msra.mxu0 0
    %225 = vmatprep.mubr.bf16.mxu0 0
    %226 = vmatmul.mubr.bf16.gmra.mxu0 %v187
    %v227 = vpop.f32.mrf.mxu0
    %v228 = vadd.f32 %v144, %v227
    %v229 = vpop.f32.mrf.mxu0
    %v230 = vpop.f32.mrf.mxu0
    %v231 = vpop.f32.mrf.mxu0
    %232 = vdwg.mxu0
    %v233 = vmul.f32 %v228, 0.5
    %v234 = vtanh.pop %v233
    %v235 = vmul.f32 %v234, 0.5
    %v236 = vadd.f32 %v235, 0.5
    %v237 = vpack.c.bf16 %v236, %v236
    %v238 = vld [vmem:[%s5] sm:$0xf]
    %v239 = vld [vmem:[%s5 + $0x4] sm:$0xf]
    %v240 = vld [vmem:[%s5 + $0x8] sm:$0xf]
    %v241 = vld [vmem:[%s5 + $0xc] sm:$0x7]
    %v242 = vld [vmem:[%s6] sm:$0x1]
    %v244 = vlaneseq
    %v245 = vshrl.u32 %v244, 7
    %v246 = vsub.s32 0, %v245
    %v247 = vrot.slane %v242, %v246
    %v253 = vunpack.c.l.b16 %v238
    %v254 = vunpack.c.l.b16 %v239
    %v255 = vunpack.c.l.b16 %v240
    %v256 = vunpack.c.l.b16 %v241
    %v257 = vpack.c.b16 %v254, %v253
    %v258 = vpack.c.b16 %v256, %v255
    %vm260 = vcmask 244736
    %v262 = vsel %vm260, %v237, 0
    %vm264 = vcmask 1046528
    %v266 = vsel %vm264, %v258, 0
    %268 = vmatprep.subr.bf16.mxu0 0
    %269 = vmatpush1.bf16.msra.mxu0 0
    %270 = vmatprep.subr.bf16.mxu0 0
    %271 = vmatpush1.bf16.msra.mxu0 0
    %272 = vmatprep.subr.bf16.mxu0 0
    %273 = vmatpush1.bf16.msra.mxu0 0
    %274 = vmatprep.subr.bf16.mxu0 0
    %275 = vmatpush1.bf16.msra.mxu0 0
    %276 = vmatprep.subr.bf16.mxu0 0
    %277 = vmatpush1.bf16.msra.mxu0 0
    %278 = vmatprep.subr.bf16.mxu0 0
    %279 = vmatpush1.bf16.msra.mxu0 0
    %280 = vmatprep.subr.bf16.mxu0 0
    %281 = vmatpush1.bf16.msra.mxu0 %v266
    %282 = vmatprep.subr.bf16.mxu0 0
    %283 = vmatpush1.bf16.msra.mxu0 %v257
    %284 = vmatprep.subr.bf16.mxu0 0
    %285 = vmatpush2.bf16.msra.mxu0 0
    %286 = vmatprep.subr.bf16.mxu0 0
    %287 = vmatpush2.bf16.msra.mxu0 0
    %288 = vmatprep.subr.bf16.mxu0 0
    %289 = vmatpush2.bf16.msra.mxu0 0
    %290 = vmatprep.subr.bf16.mxu0 0
    %291 = vmatpush2.bf16.msra.mxu0 0
    %292 = vmatprep.subr.bf16.mxu0 0
    %293 = vmatpush2.bf16.msra.mxu0 0
    %294 = vmatprep.subr.bf16.mxu0 0
    %295 = vmatpush2.bf16.msra.mxu0 0
    %296 = vmatprep.subr.bf16.mxu0 0
    %297 = vmatpush2.bf16.msra.mxu0 0
    %298 = vmatprep.subr.bf16.mxu0 0
    %299 = vmatpush2.bf16.msra.mxu0 0
    %300 = vmatprep.mubr.bf16.mxu0 0
    %301 = vmatmul.mubr.bf16.gmra.mxu0 %v262
    %v302 = vpop.f32.mrf.mxu0
    %v303 = vadd.f32 %v247, %v302
    %v304 = vpop.f32.mrf.mxu0
    %v305 = vpop.f32.mrf.mxu0
    %v306 = vpop.f32.mrf.mxu0
    %307 = vdwg.mxu0
    %vm308 = vcmask 72704
    %309 = vst.msk [vmem:[#allocation2] sm:$0xff] %vm308, %v303
    // Predicated region
    $region30: #{tpu_custom_call.1} parent=1 // pred_check
      _
    $region31: #{tpu_custom_call.1} parent=1 // pred_check_branch
      %311 = sbr.rel (0) target = $region33
    $region32: #{tpu_custom_call.1} parent=1 // pred_region
      %s313 = ssub.s32 128, 128
      %314 = vsyncadd [#allocation3], %s313
      %s316 = sshll.u32 [#allocation2], 4
      %s317 = int_to_ptr.vmem [resolvable:$true] %s316
      %319 = dma.vmem_to_hbm [thread:$0]  %s317, 128, %s7, [#allocation3]
    $region33: #{tpu_custom_call.1} parent=1 // pred_fallthru
      _
    // Predicated region
    $region34: #{tpu_custom_call.1} parent=1 // pred_check
      _
    $region35: #{tpu_custom_call.1} parent=1 // pred_check_branch
      %321 = sbr.rel (0) target = $region37
    $region36: #{tpu_custom_call.1} parent=1 // pred_region
      %322 = dma.done [#allocation3], 128
    $region37: #{tpu_custom_call.1} parent=1 // pred_fallthru
      _
    %323 = vsyncpa [#allocation3], 1

</llo_original>
